<compile_context>
chip_gen: v7x
topology: tpu7x:2x2x1
jax: 0.10.0
libtpu: 0.0.40
codegen_flags: <defaults>
</compile_context>

<pallas_src>
import functools

import jax
import jax.numpy as jnp
from jax.experimental import pallas as pl
from jax.experimental.pallas import tpu as pltpu


# ---------------------------------------------------------------------------
# Kernel
# ---------------------------------------------------------------------------
def _merge_kernel(hi_ref, ho_ref, wi_ref, bi_ref, wo_ref, bo_ref,
                  wl_ref, bl_ref, o_ref):
    mm_dtype = wi_ref.dtype            # MXU operand dtype == weight dtype

    # Cast activations to the MXU dtype in VMEM (VPU), then two MXU matmuls
    # with f32 accumulation; biases added in f32.
    hi_x = hi_ref[...].astype(mm_dtype)
    ho_x = ho_ref[...].astype(mm_dtype)
    hi = jnp.dot(hi_x, wi_ref[...], preferred_element_type=jnp.float32) + bi_ref[...]
    ho = jnp.dot(ho_x, wo_ref[...], preferred_element_type=jnp.float32) + bo_ref[...]

    # Lambda gate: [hi, ho] @ W_lambda + b_lambda, as a single fused row-wise
    # reduction (one XLU reduce instead of two).
    wl = wl_ref[...]                   # (2, H) f32: row 0 = inbound, row 1 = outbound
    gate = (jnp.sum(hi * wl[0:1, :] + ho * wl[1:2, :], axis=-1, keepdims=True)
            + bl_ref[0])
    lam = jax.nn.sigmoid(gate)         # EUP

    # Blend on the VPU: 3 ops instead of 4.
    o_ref[...] = (ho + lam * (hi - ho)).astype(o_ref.dtype)


# ---------------------------------------------------------------------------
# Planning helpers (host-side, outside jit)
# ---------------------------------------------------------------------------
def _round_up(x, m):
    return (x + m - 1) // m * m


_VMEM_CAP_CACHE = None


def _vmem_capacity_bytes():
    """Generation-aware VMEM capacity (cached); conservative fallback = 64 MiB
    (v7x per-TensorCore) so a failed query can never over-budget."""
    global _VMEM_CAP_CACHE
    if _VMEM_CAP_CACHE is None:
        cap = 64 << 20
        try:
            info = pltpu.get_tpu_info()
            cap = int(getattr(info, "vmem_capacity_bytes", cap)) or cap
        except Exception:
            pass
        _VMEM_CAP_CACHE = cap
    return _VMEM_CAP_CACHE


def _plan(n_rows, h, in_item, w_item, out_item, block_m):
    """Pick the batch tile and the VMEM limit for this call."""
    cap = _vmem_capacity_bytes()
    budget = int(cap * 0.85)

    # Sub-32-bit MXU operands pack along sublanes -> keep the row tile a
    # multiple of the packed sublane count.
    align = 16 if w_item == 2 else (32 if w_item == 1 else 8)

    # Resident, single-buffered operands: two HxH weights + (sublane-padded)
    # biases and W_lambda.
    resident = 2 * h * h * w_item + 3 * 8 * h * 4

    # Per-row pipelined VMEM: 2 inputs x 2 buffers + 1 output x 2 buffers,
    # plus the two f32 matmul intermediates (hi/ho) kept in compiler scratch,
    # plus a small margin for lam / broadcasts.
    per_row = h * (2 * 2 * in_item + 2 * out_item + 2 * 4) + 64

    if block_m >= n_rows:
        bm = n_rows                              # single full-extent tile
    else:
        bm = _round_up(min(block_m, n_rows), align)

    avail = budget - resident
    if avail > 0:
        bm_fit = max(align, (avail // per_row) // align * align)
        if bm_fit < bm:
            bm = int(bm_fit)
    # TODO(synk): if `resident` alone exceeds the budget (very large H,
    # especially on v7x's 64 MiB per-core VMEM), a K/N-tiled weight scheme is
    # needed; the whole-matrix-resident design below will not compile there.

    est = resident + bm * per_row + (1 << 20)
    vmem_limit = max(32 << 20, min(int(est * 1.2) + (2 << 20), int(cap * 0.9)))
    return int(bm), int(vmem_limit)


# ---------------------------------------------------------------------------
# pallas_call wrapper
# ---------------------------------------------------------------------------
@functools.partial(jax.jit, static_argnames=("bm", "vmem_limit"))
def _merge_call(h_in, h_out, w_in_t, b_in, w_out_t, b_out, w_lambda, b_lambda,
                *, bm, vmem_limit):
    n_rows, h = h_in.shape

    # Tiny gate params: ensure f32 layout (no-ops if already f32).
    bi = jnp.asarray(b_in, jnp.float32).reshape(1, h)
    bo = jnp.asarray(b_out, jnp.float32).reshape(1, h)
    wl = jnp.asarray(w_lambda, jnp.float32).reshape(2, h)
    bl = jnp.asarray(b_lambda, jnp.float32).reshape(-1)[:1]      # SMEM scalar

    grid = (pl.cdiv(n_rows, bm),)
    act_spec = pl.BlockSpec((bm, h), lambda i: (i, 0))
    vmem_full = pl.BlockSpec(memory_space=pltpu.MemorySpace.VMEM)  # resident, 1-buffer
    smem_full = pl.BlockSpec(memory_space=pltpu.MemorySpace.SMEM)

    return pl.pallas_call(
        _merge_kernel,
        out_shape=jax.ShapeDtypeStruct((n_rows, h), h_in.dtype),
        grid=grid,
        in_specs=[
            act_spec,      # h_inbound tile   (native dtype, cast in-kernel)
            act_spec,      # h_outbound tile
            vmem_full,     # W_in^T  (resident, MXU dtype)
            vmem_full,     # b_in
            vmem_full,     # W_out^T
            vmem_full,     # b_out
            vmem_full,     # W_lambda rows
            smem_full,     # b_lambda scalar
        ],
        out_specs=act_spec,
        compiler_params=pltpu.CompilerParams(
            dimension_semantics=("parallel",),
            vmem_limit_bytes=vmem_limit),
    )(h_in, h_out, w_in_t, bi, w_out_t, bo, wl, bl)


def merge_layer_forward(h_inbound, h_outbound, w_in_t, b_in, w_out_t, b_out,
                        w_lambda, b_lambda, *, block_m=512):
    """MergeLayer forward.

    Weights are expected pre-transposed to (in_features, out_features).  The
    MXU operand dtype is taken from the weight dtype: pass bf16 weights (via
    prepare_merge_layer_params) for the fast path; activations are cast
    in-kernel and are never padded/copied on the host side.
    """
    n_rows, h = h_inbound.shape
    bm, vmem_limit = _plan(
        n_rows, h,
        jnp.dtype(h_inbound.dtype).itemsize,
        jnp.dtype(w_in_t.dtype).itemsize,
        jnp.dtype(h_inbound.dtype).itemsize,
        block_m)
    return _merge_call(h_inbound, h_outbound, w_in_t, b_in, w_out_t, b_out,
                       w_lambda, b_lambda, bm=bm, vmem_limit=vmem_limit)


# ---------------------------------------------------------------------------
# Parameter helpers
# ---------------------------------------------------------------------------
def prepare_merge_layer_params(w_in_t, b_in, w_out_t, b_out, w_lambda, b_lambda,
                               mxu_dtype=jnp.bfloat16):
    """One-time prep (hoisted out of the per-call path): cast the two HxH
    weights to the MXU operand dtype; gate params stay f32."""
    md = jnp.dtype(mxu_dtype)
    return (w_in_t.astype(md), jnp.asarray(b_in, jnp.float32),
            w_out_t.astype(md), jnp.asarray(b_out, jnp.float32),
            jnp.asarray(w_lambda, jnp.float32),
            jnp.asarray(b_lambda, jnp.float32))


def init_merge_layer_params(key, h_size):
    """Deterministic parameter init matching MergeLayer.__init__ shapes.
    Weights stored pre-transposed: (in_features, out_features)."""
    k1, k2, k3, k4 = jax.random.split(key, 4)
    gain = 1.414
    std = gain * (2.0 / (h_size + h_size)) ** 0.5            # xavier_normal_
    w_in_t = std * jax.random.normal(k1, (h_size, h_size), jnp.float32)
    w_out_t = std * jax.random.normal(k2, (h_size, h_size), jnp.float32)
    b_in = jnp.zeros((1, h_size), jnp.float32)
    b_out = jnp.zeros((1, h_size), jnp.float32)
    # lambda_layer: nn.Linear(2*h, 1) default init.
    bound = 1.0 / (2.0 * h_size) ** 0.5
    w_lambda_flat = jax.random.uniform(k3, (2 * h_size,), jnp.float32,
                                       -bound, bound)
    w_lambda = w_lambda_flat.reshape(2, h_size)   # row 0 = inbound, row 1 = outbound
    b_lambda = jax.random.uniform(k4, (1, 1), jnp.float32, -bound, bound)
    return w_in_t, b_in, w_out_t, b_out, w_lambda, b_lambda


def reference_forward(h_inbound, h_outbound, w_in_t, b_in, w_out_t, b_out,
                      w_lambda, b_lambda):
    hi = h_inbound @ w_in_t.astype(jnp.float32) + b_in
    ho = h_outbound @ w_out_t.astype(jnp.float32) + b_out
    cat = jnp.concatenate([hi, ho], axis=1)
    lam = jax.nn.sigmoid(cat @ w_lambda.reshape(-1, 1) + b_lambda[0, 0])
    return lam * hi + (1.0 - lam) * ho


# ---------------------------------------------------------------------------
# Self-test
# ---------------------------------------------------------------------------
if __name__ == "__main__":
    h_size = 32
    batch = 8

    key = jax.random.PRNGKey(0)
    k_params, k_hi, k_ho = jax.random.split(key, 3)

    params_f32 = init_merge_layer_params(k_params, h_size)
    h_inbound = jax.random.normal(k_hi, (batch, h_size), jnp.float32)
    h_outbound = jax.random.normal(k_ho, (batch, h_size), jnp.float32)

    ref = reference_forward(h_inbound, h_outbound, *params_f32)

    # f32 MXU path (tight tolerance).
    out_f32 = jax.block_until_ready(
        merge_layer_forward(h_inbound, h_outbound, *params_f32))
    assert out_f32.shape == (batch, h_size)
    assert jnp.allclose(out_f32, ref, atol=1e-5, rtol=1e-5), "mismatch vs reference (f32)"

    # bf16 MXU fast path: weights cast ONCE outside the per-call path.
    params_bf16 = prepare_merge_layer_params(*params_f32)     # bf16 by default
    out_bf16 = jax.block_until_ready(
        merge_layer_forward(h_inbound, h_outbound, *params_bf16))
    assert out_bf16.shape == (batch, h_size)
    assert bool(jnp.all(jnp.isfinite(out_bf16)))
    assert jnp.allclose(out_bf16, ref, atol=5e-2, rtol=5e-2), "bf16 path too far off"

    # Ragged batch (not a multiple of the tile or of 8): exercises Pallas
    # partial-block masking — no host-side padding or output slicing.
    batch2 = 13
    k_hi2, k_ho2 = jax.random.split(jax.random.PRNGKey(1))
    hi2 = jax.random.normal(k_hi2, (batch2, h_size), jnp.float32)
    ho2 = jax.random.normal(k_ho2, (batch2, h_size), jnp.float32)
    out2 = jax.block_until_ready(
        merge_layer_forward(hi2, ho2, *params_f32, block_m=8))
    ref2 = reference_forward(hi2, ho2, *params_f32)
    assert out2.shape == (batch2, h_size)
    assert jnp.allclose(out2, ref2, atol=1e-5, rtol=1e-5), "mismatch vs reference (ragged)"

    print("KERNEL_OK")
</pallas_src>

<mosaic_0001>
module attributes {stable_mosaic.version = 11 : i64} {
  func.func @_merge_kernel(%arg0: i32, %arg1: memref<8x32xf32, #tpu.memory_space<vmem>>, %arg2: memref<8x32xf32, #tpu.memory_space<vmem>>, %arg3: memref<32x32xf32, #tpu.memory_space<vmem>>, %arg4: memref<1x32xf32, #tpu.memory_space<vmem>>, %arg5: memref<32x32xf32, #tpu.memory_space<vmem>>, %arg6: memref<1x32xf32, #tpu.memory_space<vmem>>, %arg7: memref<2x32xf32, #tpu.memory_space<vmem>>, %arg8: memref<1xf32, #tpu.memory_space<smem>>, %arg9: memref<8x32xf32, #tpu.memory_space<vmem>>) attributes {dimension_semantics = [#tpu.dimension_semantics<parallel>], iteration_bounds = array<i64: 1>, scalar_prefetch = 0 : i64, scratch_operands = 0 : i64, tpu.core_type = #tpu.core_type<tc>, window_params = [{transform_indices = @transform_0, window_bounds = array<i64: 8, 32>}, {transform_indices = @transform_1, window_bounds = array<i64: 8, 32>}, {pipeline_mode = #tpu.pipeline_mode<synchronous>, transform_indices = @transform_2, window_bounds = array<i64: 32, 32>}, {pipeline_mode = #tpu.pipeline_mode<synchronous>, transform_indices = @transform_3, window_bounds = array<i64: 1, 32>}, {pipeline_mode = #tpu.pipeline_mode<synchronous>, transform_indices = @transform_4, window_bounds = array<i64: 32, 32>}, {pipeline_mode = #tpu.pipeline_mode<synchronous>, transform_indices = @transform_5, window_bounds = array<i64: 1, 32>}, {pipeline_mode = #tpu.pipeline_mode<synchronous>, transform_indices = @transform_6, window_bounds = array<i64: 2, 32>}, {transform_indices = @transform_7, window_bounds = array<i64: 1>}, {transform_indices = @transform_8, window_bounds = array<i64: 8, 32>}]} {
    %c0 = arith.constant 0 : index
    %c0_0 = arith.constant 0 : index
    %0 = vector.load %arg1[%c0, %c0_0] : memref<8x32xf32, #tpu.memory_space<vmem>>, vector<8x32xf32>
    %c0_1 = arith.constant 0 : index
    %c0_2 = arith.constant 0 : index
    %1 = vector.load %arg2[%c0_1, %c0_2] : memref<8x32xf32, #tpu.memory_space<vmem>>, vector<8x32xf32>
    %c0_3 = arith.constant 0 : index
    %c0_4 = arith.constant 0 : index
    %2 = vector.load %arg3[%c0_3, %c0_4] : memref<32x32xf32, #tpu.memory_space<vmem>>, vector<32x32xf32>
    %cst = arith.constant dense<0.000000e+00> : vector<8x32xf32>
    %3 = tpu.matmul %0, %2, %cst {dimension_numbers = #tpu.dot_dimension_numbers<[1], [0], [0], [1], [0, 0, 1, 1], [], []>} : vector<8x32xf32>, vector<32x32xf32>, vector<8x32xf32> -> vector<8x32xf32>
    %c0_5 = arith.constant 0 : index
    %c0_6 = arith.constant 0 : index
    %4 = vector.load %arg4[%c0_5, %c0_6] : memref<1x32xf32, #tpu.memory_space<vmem>>, vector<1x32xf32>
    %5 = vector.broadcast %4 : vector<1x32xf32> to vector<8x32xf32>
    %6 = arith.addf %3, %5 : vector<8x32xf32>
    %c0_7 = arith.constant 0 : index
    %c0_8 = arith.constant 0 : index
    %7 = vector.load %arg5[%c0_7, %c0_8] : memref<32x32xf32, #tpu.memory_space<vmem>>, vector<32x32xf32>
    %cst_9 = arith.constant dense<0.000000e+00> : vector<8x32xf32>
    %8 = tpu.matmul %1, %7, %cst_9 {dimension_numbers = #tpu.dot_dimension_numbers<[1], [0], [0], [1], [0, 0, 1, 1], [], []>} : vector<8x32xf32>, vector<32x32xf32>, vector<8x32xf32> -> vector<8x32xf32>
    %c0_10 = arith.constant 0 : index
    %c0_11 = arith.constant 0 : index
    %9 = vector.load %arg6[%c0_10, %c0_11] : memref<1x32xf32, #tpu.memory_space<vmem>>, vector<1x32xf32>
    %10 = vector.broadcast %9 : vector<1x32xf32> to vector<8x32xf32>
    %11 = arith.addf %8, %10 : vector<8x32xf32>
    %c0_12 = arith.constant 0 : index
    %c0_13 = arith.constant 0 : index
    %12 = vector.load %arg7[%c0_12, %c0_13] : memref<2x32xf32, #tpu.memory_space<vmem>>, vector<2x32xf32>
    %13 = vector.extract_strided_slice %12 {offsets = [0, 0], sizes = [1, 32], strides = [1, 1]} : vector<2x32xf32> to vector<1x32xf32>
    %14 = vector.broadcast %13 : vector<1x32xf32> to vector<8x32xf32>
    %15 = arith.mulf %6, %14 : vector<8x32xf32>
    %16 = vector.extract_strided_slice %12 {offsets = [1, 0], sizes = [1, 32], strides = [1, 1]} : vector<2x32xf32> to vector<1x32xf32>
    %17 = vector.broadcast %16 : vector<1x32xf32> to vector<8x32xf32>
    %18 = arith.mulf %11, %17 : vector<8x32xf32>
    %19 = arith.addf %15, %18 : vector<8x32xf32>
    %cst_14 = arith.constant dense<0.000000e+00> : vector<8xf32>
    %20 = vector.multi_reduction <add>, %19, %cst_14 [1] : vector<8x32xf32> to vector<8xf32>
    %21 = vector.shape_cast %20 : vector<8xf32> to vector<8x1xf32>
    %c0_15 = arith.constant 0 : index
    %22 = memref.load %arg8[%c0_15] : memref<1xf32, #tpu.memory_space<smem>>
    %23 = vector.broadcast %22 : f32 to vector<8x1xf32>
    %24 = arith.addf %21, %23 : vector<8x1xf32>
    %25 = arith.negf %24 : vector<8x1xf32>
    %26 = math.exp %25 : vector<8x1xf32>
    %cst_16 = arith.constant 1.000000e+00 : f32
    %27 = vector.broadcast %cst_16 : f32 to vector<8x1xf32>
    %28 = arith.addf %27, %26 : vector<8x1xf32>
    %29 = arith.divf %27, %28 : vector<8x1xf32>
    %30 = arith.subf %6, %11 : vector<8x32xf32>
    %31 = vector.broadcast %29 : vector<8x1xf32> to vector<8x32xf32>
    %32 = arith.mulf %31, %30 : vector<8x32xf32>
    %33 = arith.addf %11, %32 : vector<8x32xf32>
    %c0_17 = arith.constant 0 : index
    %c0_18 = arith.constant 0 : index
    %34 = vector.load %arg9[%c0_17, %c0_18] : memref<8x32xf32, #tpu.memory_space<vmem>>, vector<8x32xf32>
    tpu.vector_store %arg9[%c0_17, %c0_18], %33 {strides = array<i32>} : memref<8x32xf32, #tpu.memory_space<vmem>>, vector<8x32xf32>,
    return
  }
  func.func @transform_0(%arg0: i32) -> (i32, i32) {
    %c0_i32 = arith.constant 0 : i32
    %c0_i32_0 = arith.constant 0 : i32
    return %arg0, %c0_i32 : i32, i32
  }
  func.func @transform_1(%arg0: i32) -> (i32, i32) {
    %c0_i32 = arith.constant 0 : i32
    %c0_i32_0 = arith.constant 0 : i32
    return %arg0, %c0_i32 : i32, i32
  }
  func.func @transform_2(%arg0: i32) -> (i32, i32) {
    %c0_i32 = arith.constant 0 : i32
    %c0_i32_0 = arith.constant 0 : i32
    %c0_i32_1 = arith.constant 0 : i32
    return %c0_i32, %c0_i32_0 : i32, i32
  }
  func.func @transform_3(%arg0: i32) -> (i32, i32) {
    %c0_i32 = arith.constant 0 : i32
    %c0_i32_0 = arith.constant 0 : i32
    %c0_i32_1 = arith.constant 0 : i32
    return %c0_i32, %c0_i32_0 : i32, i32
  }
  func.func @transform_4(%arg0: i32) -> (i32, i32) {
    %c0_i32 = arith.constant 0 : i32
    %c0_i32_0 = arith.constant 0 : i32
    %c0_i32_1 = arith.constant 0 : i32
    return %c0_i32, %c0_i32_0 : i32, i32
  }
  func.func @transform_5(%arg0: i32) -> (i32, i32) {
    %c0_i32 = arith.constant 0 : i32
    %c0_i32_0 = arith.constant 0 : i32
    %c0_i32_1 = arith.constant 0 : i32
    return %c0_i32, %c0_i32_0 : i32, i32
  }
  func.func @transform_6(%arg0: i32) -> (i32, i32) {
    %c0_i32 = arith.constant 0 : i32
    %c0_i32_0 = arith.constant 0 : i32
    %c0_i32_1 = arith.constant 0 : i32
    return %c0_i32, %c0_i32_0 : i32, i32
  }
  func.func @transform_7(%arg0: i32) -> i32 {
    %c0_i32 = arith.constant 0 : i32
    %c0_i32_0 = arith.constant 0 : i32
    return %c0_i32 : i32
  }
  func.func @transform_8(%arg0: i32) -> (i32, i32) {
    %c0_i32 = arith.constant 0 : i32
    %c0_i32_0 = arith.constant 0 : i32
    return %arg0, %c0_i32 : i32, i32
  }
}

</mosaic_0001>

<llo_original>
// kernel: _merge_call.1
$region0: #{_merge_call.1}
  #allocation0 [shape = 'u32[]', space=smem, size = 0x4, offset = 0x4, fixed_abs, tag = 'smem constant byte address 0x4 - core index']
  #allocation1 [shape = 'u32[144,128]{1,0:T(1,128)}', space=vmem, size = 0x12000, scoped, tag = 'internal scratch']
  #allocation2 [shape = 'f32[1]{0:T(128)S(6)}', space=smem, size = 0x200, scoped, tag = 'scoped memory for _merge_call.1']
  %s0 = inlined_call_operand.hbm [shape: f32[8,32], index: 0, kind: input, shape index: {}]
  %s1 = inlined_call_operand.vmem [shape: f32[8,32], index: 1, kind: input, shape index: {}]
  %s2 = inlined_call_operand.hbm [shape: f32[32,32], index: 2, kind: input, shape index: {}]
  %s3 = inlined_call_operand.vmem [shape: f32[1,32], index: 3, kind: input, shape index: {}]
  %s4 = inlined_call_operand.hbm [shape: f32[32,32], index: 4, kind: input, shape index: {}]
  %s5 = inlined_call_operand.vmem [shape: f32[1,32], index: 5, kind: input, shape index: {}]
  %s6 = inlined_call_operand.vmem [shape: f32[2,32], index: 6, kind: input, shape index: {}]
  %s7 = inlined_call_operand.<no memory space> [shape: f32[1], index: 7, kind: input, shape index: {}]
  %s8 = inlined_call_operand.hbm [shape: f32[8,32], index: 8, kind: output, shape index: {}]
  %s9 = sld [smem:[#allocation0]]
  $region54: #{_merge_call.1} parent=0
    _
  %s11 = ssub.s32 1, %s9
  %s12 = scalar_select 0, %s11, %s9
  %13 = sst [smem:[#allocation2]] %s7
  $region1: #{_merge_call.1} parent=0
    #allocation3 [shape = 'u8[4096]{0}', space=vmem, size = 0x1000, scoped, tag = 'input window, operand 0, single buffered']
    #allocation4 [shape = 's32[1]{0}', space=sflag, size = 0x4, scoped, tag = 'scoped memory for _merge_call.1']
    #allocation5 [shape = 's32[1]{0}', space=sflag, size = 0x4, scoped, tag = 'scoped memory for _merge_call.1']
    #allocation6 [shape = 'u8[16384]{0}', space=vmem, size = 0x4000, scoped, tag = 'input window, operand 2, single buffered']
    #allocation7 [shape = 's32[1]{0}', space=sflag, size = 0x4, scoped, tag = 'scoped memory for _merge_call.1']
    #allocation8 [shape = 'u8[16384]{0}', space=vmem, size = 0x4000, scoped, tag = 'input window, operand 4, single buffered']
    #allocation9 [shape = 'u8[4096]{0}', space=vmem, size = 0x1000, scoped, tag = 'output window, operand 0, single buffered']
    %14 = vsyncpa [#allocation4], 0
    %15 = vsyncpa [#allocation7], 0
    %16 = vsyncpa [#allocation5], 0
    // Predicated region
    $region2: #{_merge_call.1} parent=1 // pred_check
      _
    $region3: #{_merge_call.1} parent=1 // pred_check_branch
      %18 = sbr.rel (0) target = $region5
    $region4: #{_merge_call.1} parent=1 // pred_region
      %s20 = ssub.s32 128, 128
      %21 = vsyncadd [#allocation4], %s20
      %s23 = sshll.u32 [#allocation3], 4
      %s24 = int_to_ptr.vmem [resolvable:$true] %s23
      %26 = dma.hbm_to_vmem [thread:$0]  %s0, 128, %s24, [#allocation4]
    $region5: #{_merge_call.1} parent=1 // pred_fallthru
      _
    // Predicated region
    $region6: #{_merge_call.1} parent=1 // pred_check
      _
    $region7: #{_merge_call.1} parent=1 // pred_check_branch
      %28 = sbr.rel (0) target = $region9
    $region8: #{_merge_call.1} parent=1 // pred_region
      _
    $region9: #{_merge_call.1} parent=1 // pred_fallthru
      _
    // Predicated region
    $region10: #{_merge_call.1} parent=1 // pred_check
      _
    $region11: #{_merge_call.1} parent=1 // pred_check_branch
      %30 = sbr.rel (0) target = $region13
    $region12: #{_merge_call.1} parent=1 // pred_region
      %s32 = ssub.s32 512, 512
      %33 = vsyncadd [#allocation7], %s32
      %s34 = sshll.u32 [#allocation6], 4
      %s35 = int_to_ptr.vmem [resolvable:$true] %s34
      %40 = dma.hbm_to_vmem [thread:$0]  %s2, 512, %s35, [#allocation7], 128, 128, 8
    $region13: #{_merge_call.1} parent=1 // pred_fallthru
      _
    // Predicated region
    $region14: #{_merge_call.1} parent=1 // pred_check
      _
    $region15: #{_merge_call.1} parent=1 // pred_check_branch
      %42 = sbr.rel (0) target = $region17
    $region16: #{_merge_call.1} parent=1 // pred_region
      _
    $region17: #{_merge_call.1} parent=1 // pred_fallthru
      _
    // Predicated region
    $region18: #{_merge_call.1} parent=1 // pred_check
      _
    $region19: #{_merge_call.1} parent=1 // pred_check_branch
      %44 = sbr.rel (0) target = $region21
    $region20: #{_merge_call.1} parent=1 // pred_region
      %s46 = ssub.s32 512, 512
      %47 = vsyncadd [#allocation7], %s46
      %s48 = sshll.u32 [#allocation8], 4
      %s49 = int_to_ptr.vmem [resolvable:$true] %s48
      %54 = dma.hbm_to_vmem [thread:$0]  %s4, 512, %s49, [#allocation7], 128, 128, 8
    $region21: #{_merge_call.1} parent=1 // pred_fallthru
      _
    // Predicated region
    $region22: #{_merge_call.1} parent=1 // pred_check
      _
    $region23: #{_merge_call.1} parent=1 // pred_check_branch
      %56 = sbr.rel (0) target = $region25
    $region24: #{_merge_call.1} parent=1 // pred_region
      _
    $region25: #{_merge_call.1} parent=1 // pred_fallthru
      _
    // Predicated region
    $region26: #{_merge_call.1} parent=1 // pred_check
      _
    $region27: #{_merge_call.1} parent=1 // pred_check_branch
      %58 = sbr.rel (0) target = $region29
    $region28: #{_merge_call.1} parent=1 // pred_region
      _
    $region29: #{_merge_call.1} parent=1 // pred_fallthru
      _
    // Predicated region
    $region30: #{_merge_call.1} parent=1 // pred_check
      _
    $region31: #{_merge_call.1} parent=1 // pred_check_branch
      %60 = sbr.rel (0) target = $region33
    $region32: #{_merge_call.1} parent=1 // pred_region
      _
    $region33: #{_merge_call.1} parent=1 // pred_fallthru
      _
    // Predicated region
    $region34: #{_merge_call.1} parent=1 // pred_check
      _
    $region35: #{_merge_call.1} parent=1 // pred_check_branch
      %62 = sbr.rel (0) target = $region37
    $region36: #{_merge_call.1} parent=1 // pred_region
      %63 = dma.done [#allocation4], 128
    $region37: #{_merge_call.1} parent=1 // pred_fallthru
      _
    // Predicated region
    $region38: #{_merge_call.1} parent=1 // pred_check
      _
    $region39: #{_merge_call.1} parent=1 // pred_check_branch
      %65 = sbr.rel (0) target = $region41
    $region40: #{_merge_call.1} parent=1 // pred_region
      %66 = dma.done [#allocation7], 512
    $region41: #{_merge_call.1} parent=1 // pred_fallthru
      _
    // Predicated region
    $region42: #{_merge_call.1} parent=1 // pred_check
      _
    $region43: #{_merge_call.1} parent=1 // pred_check_branch
      %68 = sbr.rel (0) target = $region45
    $region44: #{_merge_call.1} parent=1 // pred_region
      %69 = dma.done [#allocation7], 512
    $region45: #{_merge_call.1} parent=1 // pred_fallthru
      _
    %v70 = vld [vmem:[#allocation3] sm:$0xff]
    %v71 = vld [vmem:[%s1] sm:$0xff]
    %v72 = vld [vmem:[#allocation6] sm:$0xff]
    %v73 = vld [vmem:[#allocation6 + $0x8] sm:$0xff]
    %v74 = vld [vmem:[#allocation6 + $0x10] sm:$0xff]
    %v75 = vld [vmem:[#allocation6 + $0x18] sm:$0xff]
    %v76 = vld [vmem:[%s3] sm:$0x1]
    %v78 = vlaneseq
    %v79 = vshrl.u32 %v78, 7
    %v80 = vsub.s32 0, %v79
    %v81 = vrot.slane %v76, %v80
    %vm83 = vcmask 261120
    %v85 = vsel %vm83, %v70, 0
    %87 = vmatprep.subr.mxu0 0.0
    %88 = vmatpush1.msra.mxu0 %v72
    %89 = vmatprep.subr.mxu0 0.0
    %90 = vmatpush1.msra.mxu0 %v73
    %91 = vmatprep.subr.mxu0 0.0
    %92 = vmatpush1.msra.mxu0 %v74
    %93 = vmatprep.subr.mxu0 0.0
    %94 = vmatpush1.msra.mxu0 %v75
    %95 = vmatprep.subr.mxu0 0.0
    %96 = vmatpush1.msra.mxu0 0.0
    %97 = vmatprep.subr.mxu0 0.0
    %98 = vmatpush1.msra.mxu0 0.0
    %99 = vmatprep.subr.mxu0 0.0
    %100 = vmatpush1.msra.mxu0 0.0
    %101 = vmatprep.subr.mxu0 0.0
    %102 = vmatpush1.msra.mxu0 0.0
    %103 = vmatprep.subr.mxu0 0.0
    %104 = vmatpush1.msra.mxu0 0.0
    %105 = vmatprep.subr.mxu0 0.0
    %106 = vmatpush1.msra.mxu0 0.0
    %107 = vmatprep.subr.mxu0 0.0
    %108 = vmatpush1.msra.mxu0 0.0
    %109 = vmatprep.subr.mxu0 0.0
    %110 = vmatpush1.msra.mxu0 0.0
    %111 = vmatprep.subr.mxu0 0.0
    %112 = vmatpush1.msra.mxu0 0.0
    %113 = vmatprep.subr.mxu0 0.0
    %114 = vmatpush1.msra.mxu0 0.0
    %115 = vmatprep.subr.mxu0 0.0
    %116 = vmatpush1.msra.mxu0 0.0
    %117 = vmatprep.subr.mxu0 0.0
    %118 = vmatpush1.msra.mxu0 0.0
    %119 = vmatprep.subr.mxu0 0.0
    %120 = vmatpush1.msra.mxu0 0.0
    %121 = vmatprep.subr.mxu0 0.0
    %122 = vmatpush1.msra.mxu0 0.0
    %123 = vmatprep.subr.mxu0 0.0
    %124 = vmatpush1.msra.mxu0 0.0
    %125 = vmatprep.subr.mxu0 0.0
    %126 = vmatpush1.msra.mxu0 0.0
    %127 = vmatprep.subr.mxu0 0.0
    %128 = vmatpush1.msra.mxu0 0.0
    %129 = vmatprep.subr.mxu0 0.0
    %130 = vmatpush1.msra.mxu0 0.0
    %131 = vmatprep.subr.mxu0 0.0
    %132 = vmatpush1.msra.mxu0 0.0
    %133 = vmatprep.subr.mxu0 0.0
    %134 = vmatpush1.msra.mxu0 0.0
    %135 = vmatprep.subr.mxu0 0.0
    %136 = vmatpush1.msra.mxu0 0.0
    %137 = vmatprep.subr.mxu0 0.0
    %138 = vmatpush1.msra.mxu0 0.0
    %139 = vmatprep.subr.mxu0 0.0
    %140 = vmatpush1.msra.mxu0 0.0
    %141 = vmatprep.subr.mxu0 0.0
    %142 = vmatpush1.msra.mxu0 0.0
    %143 = vmatprep.subr.mxu0 0.0
    %144 = vmatpush1.msra.mxu0 0.0
    %145 = vmatprep.subr.mxu0 0.0
    %146 = vmatpush1.msra.mxu0 0.0
    %147 = vmatprep.subr.mxu0 0.0
    %148 = vmatpush1.msra.mxu0 0.0
    %149 = vmatprep.subr.mxu0 0.0
    %150 = vmatpush1.msra.mxu0 0.0
    %151 = vmatprep.mubr.f32.mxu0 0.0
    %152 = vmatmul.mubr.f32.gmra.mrb[0].mxu0 %v85
    %v153 = vpop.f32.mrb[0].mxu0
    %v154 = vadd.f32 %v81, %v153
    %v155 = vpop.f32.mrb[0].mxu0
    %156 = vdwg.mxu0
    %v157 = vld [vmem:[#allocation8] sm:$0xff]
    %v158 = vld [vmem:[#allocation8 + $0x8] sm:$0xff]
    %v159 = vld [vmem:[#allocation8 + $0x10] sm:$0xff]
    %v160 = vld [vmem:[#allocation8 + $0x18] sm:$0xff]
    %v161 = vld [vmem:[%s5] sm:$0x1]
    %v163 = vlaneseq
    %v164 = vshrl.u32 %v163, 7
    %v165 = vsub.s32 0, %v164
    %v166 = vrot.slane %v161, %v165
    %v169 = vsel %vm83, %v71, 0
    %171 = vmatprep.subr.mxu0 0.0
    %172 = vmatpush1.msra.mxu0 %v157
    %173 = vmatprep.subr.mxu0 0.0
    %174 = vmatpush1.msra.mxu0 %v158
    %175 = vmatprep.subr.mxu0 0.0
    %176 = vmatpush1.msra.mxu0 %v159
    %177 = vmatprep.subr.mxu0 0.0
    %178 = vmatpush1.msra.mxu0 %v160
    %179 = vmatprep.subr.mxu0 0.0
    %180 = vmatpush1.msra.mxu0 0.0
    %181 = vmatprep.subr.mxu0 0.0
    %182 = vmatpush1.msra.mxu0 0.0
    %183 = vmatprep.subr.mxu0 0.0
    %184 = vmatpush1.msra.mxu0 0.0
    %185 = vmatprep.subr.mxu0 0.0
    %186 = vmatpush1.msra.mxu0 0.0
    %187 = vmatprep.subr.mxu0 0.0
    %188 = vmatpush1.msra.mxu0 0.0
    %189 = vmatprep.subr.mxu0 0.0
    %190 = vmatpush1.msra.mxu0 0.0
    %191 = vmatprep.subr.mxu0 0.0
    %192 = vmatpush1.msra.mxu0 0.0
    %193 = vmatprep.subr.mxu0 0.0
    %194 = vmatpush1.msra.mxu0 0.0
    %195 = vmatprep.subr.mxu0 0.0
    %196 = vmatpush1.msra.mxu0 0.0
    %197 = vmatprep.subr.mxu0 0.0
    %198 = vmatpush1.msra.mxu0 0.0
    %199 = vmatprep.subr.mxu0 0.0
    %200 = vmatpush1.msra.mxu0 0.0
    %201 = vmatprep.subr.mxu0 0.0
    %202 = vmatpush1.msra.mxu0 0.0
    %203 = vmatprep.subr.mxu0 0.0
    %204 = vmatpush1.msra.mxu0 0.0
    %205 = vmatprep.subr.mxu0 0.0
    %206 = vmatpush1.msra.mxu0 0.0
    %207 = vmatprep.subr.mxu0 0.0
    %208 = vmatpush1.msra.mxu0 0.0
    %209 = vmatprep.subr.mxu0 0.0
    %210 = vmatpush1.msra.mxu0 0.0
    %211 = vmatprep.subr.mxu0 0.0
    %212 = vmatpush1.msra.mxu0 0.0
    %213 = vmatprep.subr.mxu0 0.0
    %214 = vmatpush1.msra.mxu0 0.0
    %215 = vmatprep.subr.mxu0 0.0
    %216 = vmatpush1.msra.mxu0 0.0
    %217 = vmatprep.subr.mxu0 0.0
    %218 = vmatpush1.msra.mxu0 0.0
    %219 = vmatprep.subr.mxu0 0.0
    %220 = vmatpush1.msra.mxu0 0.0
    %221 = vmatprep.subr.mxu0 0.0
    %222 = vmatpush1.msra.mxu0 0.0
    %223 = vmatprep.subr.mxu0 0.0
    %224 = vmatpush1.msra.mxu0 0.0
    %225 = vmatprep.subr.mxu0 0.0
    %226 = vmatpush1.msra.mxu0 0.0
    %227 = vmatprep.subr.mxu0 0.0
    %228 = vmatpush1.msra.mxu0 0.0
    %229 = vmatprep.subr.mxu0 0.0
    %230 = vmatpush1.msra.mxu0 0.0
    %231 = vmatprep.subr.mxu0 0.0
    %232 = vmatpush1.msra.mxu0 0.0
    %233 = vmatprep.subr.mxu0 0.0
    %234 = vmatpush1.msra.mxu0 0.0
    %235 = vmatprep.mubr.f32.mxu0 0.0
    %236 = vmatmul.mubr.f32.gmra.mrb[0].mxu0 %v169
    %v237 = vpop.f32.mrb[0].mxu0
    %v238 = vadd.f32 %v166, %v237
    %v239 = vpop.f32.mrb[0].mxu0
    %240 = vdwg.mxu0
    %v241 = vld [vmem:[%s6] sm:$0x3]
    %v242 = vlaneseq
    %v243 = vshrl.u32 %v242, 7
    %v244 = vsub.s32 0, %v243
    %v245 = vrot.slane %v241, %v244
    %v246 = vmul.f32 %v154, %v245
    %v247 = vlaneseq
    %v248 = vshrl.u32 %v247, 7
    %v249 = vsub.s32 1, %v248
    %v250 = vrot.slane %v241, %v249
    %v251 = vmul.f32 %v238, %v250
    %v252 = vadd.f32 %v246, %v251
    %v253 = vsel %vm83, %v252, 0.0
    %254 = vadd.xlane.f32.xlu0 %v253
    %v255 = vpop.xlane.xlu0 %254
    %s256 = sld [smem:[#allocation2]]
    %v257 = vstv %s256
    %v258 = vadd.f32 %v255, %v257
    %v259 = vxor.u32 %v258, 2147483648
    %v260 = vmul.f32 %v259, 1.442695
    %v261 = vpow.pop %v260
    %v262 = vadd.f32 %v261, 1.0
    %v263 = vrcp.pop %v262
    %v264 = vmul.f32 1.0, %v263
    %v265 = vsub.f32 %v154, %v238
    %v266 = vmul.f32 %v264, %v265
    %v267 = vadd.f32 %v238, %v266
    %268 = vst.msk [vmem:[#allocation9] sm:$0xff] %vm83, %v267
    // Predicated region
    $region46: #{_merge_call.1} parent=1 // pred_check
      _
    $region47: #{_merge_call.1} parent=1 // pred_check_branch
      %270 = sbr.rel (0) target = $region49
    $region48: #{_merge_call.1} parent=1 // pred_region
      %s272 = ssub.s32 128, 128
      %273 = vsyncadd [#allocation5], %s272
      %s275 = sshll.u32 [#allocation9], 4
      %s276 = int_to_ptr.vmem [resolvable:$true] %s275
      %278 = dma.vmem_to_hbm [thread:$0]  %s276, 128, %s8, [#allocation5]
    $region49: #{_merge_call.1} parent=1 // pred_fallthru
      _
    // Predicated region
    $region50: #{_merge_call.1} parent=1 // pred_check
      _
    $region51: #{_merge_call.1} parent=1 // pred_check_branch
      %280 = sbr.rel (0) target = $region53
    $region52: #{_merge_call.1} parent=1 // pred_region
      %281 = dma.done [#allocation5], 128
    $region53: #{_merge_call.1} parent=1 // pred_fallthru
      _
    %282 = vsyncpa [#allocation4], 1
    %283 = vsyncpa [#allocation7], 1
    %284 = vsyncpa [#allocation5], 1

</llo_original>
